<compile_context>
chip_gen: v5e
topology: v5e:2x2
jax: 0.10.0
libtpu: 0.0.40
codegen_flags: <defaults>
</compile_context>

<pallas_src>
import functools

import jax
import jax.numpy as jnp
from jax.experimental import pallas as pl
from jax.experimental.pallas import tpu as pltpu

LANES = 128
MAX_TILE_ROWS = 4096  # (4096, 128) f32 block = 2 MiB


def _pow_static(base, gamma):
    """(1 - pt) ** gamma with an integer-exponent fast path (static gamma)."""
    g_int = int(round(gamma))
    if abs(gamma - g_int) < 1e-9 and 0 <= g_int <= 8:
        if g_int == 0:
            return jnp.ones_like(base)
        result = base
        for _ in range(g_int - 1):
            result = result * base
        return result
    return jnp.power(base, gamma)


def _focal_unweighted(x, t, gamma):
    """Elementwise (1 - pt)**gamma * bce (alpha hoisted to the caller)."""
    x = x.astype(jnp.float32)
    t = t.astype(jnp.float32)
    # Numerically stable BCE-with-logits (matches F.binary_cross_entropy_with_logits):
    #   bce = max(x, 0) - x*t + log(1 + exp(-|x|))
    bce = jnp.maximum(x, 0.0) - x * t + jnp.log1p(jnp.exp(-jnp.abs(x)))
    pt = jnp.exp(-bce)
    return _pow_static(1.0 - pt, gamma) * bce


def _focal_loss_kernel(logits_ref, targets_ref, out_ref, *, gamma, tile_rows):
    # Zero the resident (8, 128) accumulator block at the start of each chunk.
    @pl.when(pl.program_id(1) == 0)
    def _():
        out_ref[...] = jnp.zeros_like(out_ref)

    f = _focal_unweighted(logits_ref[...], targets_ref[...], gamma)

    # Reduce the (tile_rows, 128) tile down to (8, 128) with pure VPU vreg adds
    # and accumulate into the resident output block (no cross-lane XLU reduce
    # and no scalar dependency chain per step).
    out_ref[...] += jnp.sum(f.reshape(tile_rows // 8, 8, LANES), axis=0)


def _num_tensorcores():
    """Conservative TensorCore count (1 if it cannot be determined)."""
    try:
        info = pltpu.get_tpu_info()
    except Exception:
        return 1
    for attr in ("num_cores", "core_count", "num_tensorcores",
                 "num_tensor_cores", "cores_per_chip"):
        v = getattr(info, attr, None)
        if isinstance(v, int) and 1 <= v <= 8:
            return v
    return 1


def binary_sigmoid_focal_loss_sum(logits, targets, gamma, alpha):
    """Pallas implementation of BinarySigmoidFocalLoss.forward (returns scalar sum)."""
    assert logits.shape == targets.shape
    gamma = float(gamma)
    alpha = float(alpha)

    n = logits.size
    logits_flat = jnp.ravel(logits)    # native dtype; cast happens in-kernel
    targets_flat = jnp.ravel(targets)

    total = jnp.float32(0.0)
    n_used = 0

    full_rows = n // LANES
    if full_rows >= 8:
        # Tile selection: roughly equal tiles no larger than MAX_TILE_ROWS rows,
        # rows a multiple of 8, so the in-kernel (.,8,128) reshape is vreg-aligned.
        n_tiles_target = pl.cdiv(full_rows, MAX_TILE_ROWS)
        tile_rows = (full_rows // n_tiles_target // 8) * 8
        n_tiles = full_rows // tile_rows

        # Megacore split only when >1 TC is available and there is enough work;
        # on single-TC v5e/v6e this stays a plain 1-D reduction (no padding,
        # no extra bookkeeping).
        cores = _num_tensorcores()
        n_chunks = cores if (cores > 1 and n_tiles >= 2 * cores) else 1
        n_tiles_used = (n_tiles // n_chunks) * n_chunks
        steps_per_chunk = n_tiles_used // n_chunks

        rows_used = n_tiles_used * tile_rows
        n_used = rows_used * LANES

        # Pure reshape of the aligned prefix (no jnp.pad, no mask stream).
        logits2d = logits_flat[:n_used].reshape(rows_used, LANES)
        targets2d = targets_flat[:n_used].reshape(rows_used, LANES)

        in_spec = pl.BlockSpec(
            (tile_rows, LANES), lambda c, i: (c * steps_per_chunk + i, 0)
        )
        # One resident (8, 128) accumulator block per chunk.
        out_spec = pl.BlockSpec((8, LANES), lambda c, i: (c, 0))

        kernel = functools.partial(
            _focal_loss_kernel, gamma=gamma, tile_rows=tile_rows
        )

        partials = pl.pallas_call(
            kernel,
            out_shape=jax.ShapeDtypeStruct((n_chunks * 8, LANES), jnp.float32),
            grid_spec=pltpu.PrefetchScalarGridSpec(
                num_scalar_prefetch=0,
                grid=(n_chunks, steps_per_chunk),
                in_specs=[in_spec, in_spec],
                out_specs=out_spec,
            ),
            compiler_params=pltpu.CompilerParams(
                dimension_semantics=("parallel", "arbitrary")
            ),
        )(logits2d, targets2d)

        # Tiny final reduction (<= n_chunks * 8 * 128 floats) in plain XLA.
        total = jnp.sum(partials)

    if n_used < n:
        # Ragged tail (< one tile of elements): plain jnp, no padding anywhere.
        total = total + jnp.sum(
            _focal_unweighted(logits_flat[n_used:], targets_flat[n_used:], gamma)
        )

    # alpha is a constant scalar factor of the whole sum -> applied once here.
    return alpha * total


class BinarySigmoidFocalLossPallas:
    """Mirror of the PyTorch module's __init__ / forward."""

    def __init__(self, gamma, alpha):
        self.gamma = gamma[0] if hasattr(gamma, "__getitem__") else gamma
        self.alpha = alpha[0] if hasattr(alpha, "__getitem__") else alpha

    def __call__(self, logits, targets):
        return binary_sigmoid_focal_loss_sum(logits, targets, self.gamma, self.alpha)


def _reference(logits, targets, gamma, alpha):
    return alpha * jnp.sum(_focal_unweighted(logits, targets, float(gamma)))


if __name__ == "__main__":
    # Deterministic module parameters (module __init__ takes scalars).
    gamma, alpha = 2.0, 0.25
    module = BinarySigmoidFocalLossPallas(gamma, alpha)

    # Small NCHW-shaped inputs: batch=2, channels=4, spatial=16x16 (tile-aligned).
    key = jax.random.PRNGKey(0)
    k1, k2 = jax.random.split(key)
    logits = jax.random.normal(k1, (2, 4, 16, 16), dtype=jnp.float32)
    targets = (jax.random.uniform(k2, (2, 4, 16, 16)) > 0.5).astype(jnp.float32)

    loss = jax.block_until_ready(module(logits, targets))
    ref = _reference(logits, targets, gamma, alpha)
    assert jnp.allclose(loss, ref, rtol=1e-5, atol=1e-5), (loss, ref)

    # Ragged-tail path: kernel handles the aligned prefix, jnp the remainder.
    k3, k4 = jax.random.split(k1)
    big_logits = jax.random.normal(k3, (3, 5, 37, 41), dtype=jnp.float32)
    big_targets = (jax.random.uniform(k4, (3, 5, 37, 41)) > 0.5).astype(jnp.float32)
    big_loss = jax.block_until_ready(module(big_logits, big_targets))
    big_ref = _reference(big_logits, big_targets, gamma, alpha)
    assert jnp.allclose(big_loss, big_ref, rtol=1e-4, atol=1e-3), (big_loss, big_ref)

    # Multi-tile path: exercises the resident accumulator across grid steps.
    k5, k6 = jax.random.split(k3)
    med_logits = jax.random.normal(k5, (4, 4, 180, 200), dtype=jnp.float32)
    med_targets = (jax.random.uniform(k6, (4, 4, 180, 200)) > 0.5).astype(jnp.float32)
    med_loss = jax.block_until_ready(module(med_logits, med_targets))
    med_ref = _reference(med_logits, med_targets, gamma, alpha)
    assert jnp.allclose(med_loss, med_ref, rtol=1e-4, atol=1e-2), (med_loss, med_ref)

    print("KERNEL_OK")
</pallas_src>

<mosaic_0001>
module attributes {stable_mosaic.version = 11 : i64} {
  func.func @_focal_loss_kernel(%arg0: i32, %arg1: i32, %arg2: memref<16x128xf32, #tpu.memory_space<vmem>>, %arg3: memref<16x128xf32, #tpu.memory_space<vmem>>, %arg4: memref<8x128xf32, #tpu.memory_space<vmem>>) attributes {dimension_semantics = [#tpu.dimension_semantics<parallel>, #tpu.dimension_semantics<arbitrary>], iteration_bounds = array<i64: 1, 1>, scalar_prefetch = 0 : i64, scratch_operands = 0 : i64, tpu.core_type = #tpu.core_type<tc>, window_params = [{transform_indices = @transform_0, window_bounds = array<i64: 16, 128>}, {transform_indices = @transform_1, window_bounds = array<i64: 16, 128>}, {transform_indices = @transform_2, window_bounds = array<i64: 8, 128>}]} {
    %c0_i32 = arith.constant 0 : i32
    %0 = arith.cmpi eq, %arg1, %c0_i32 : i32
    %1 = arith.extui %0 : i1 to i32
    %c0_i32_0 = arith.constant 0 : i32
    %2 = arith.cmpi ne, %1, %c0_i32_0 : i32
    scf.if %2 {
      %cst_12 = arith.constant 0.000000e+00 : f32
      %27 = vector.broadcast %cst_12 : f32 to vector<8x128xf32>
      %c0_13 = arith.constant 0 : index
      %c0_14 = arith.constant 0 : index
      %28 = vector.load %arg4[%c0_13, %c0_14] : memref<8x128xf32, #tpu.memory_space<vmem>>, vector<8x128xf32>
      tpu.vector_store %arg4[%c0_13, %c0_14], %27 {strides = array<i32>} : memref<8x128xf32, #tpu.memory_space<vmem>>, vector<8x128xf32>,
    } else {
    }
    %c0 = arith.constant 0 : index
    %c0_1 = arith.constant 0 : index
    %3 = vector.load %arg2[%c0, %c0_1] : memref<16x128xf32, #tpu.memory_space<vmem>>, vector<16x128xf32>
    %c0_2 = arith.constant 0 : index
    %c0_3 = arith.constant 0 : index
    %4 = vector.load %arg3[%c0_2, %c0_3] : memref<16x128xf32, #tpu.memory_space<vmem>>, vector<16x128xf32>
    %cst = arith.constant 0.000000e+00 : f32
    %5 = vector.broadcast %cst : f32 to vector<16x128xf32>
    %6 = arith.maximumf %3, %5 : vector<16x128xf32>
    %7 = arith.mulf %3, %4 : vector<16x128xf32>
    %8 = arith.subf %6, %7 : vector<16x128xf32>
    %9 = math.absf %3 : vector<16x128xf32>
    %cst_4 = arith.constant 0.000000e+00 : f32
    %10 = vector.broadcast %cst_4 : f32 to vector<16x128xf32>
    %11 = arith.subf %10, %9 : vector<16x128xf32>
    %12 = math.exp %11 : vector<16x128xf32>
    %13 = math.log1p %12 : vector<16x128xf32>
    %14 = arith.addf %8, %13 : vector<16x128xf32>
    %cst_5 = arith.constant 0.000000e+00 : f32
    %15 = vector.broadcast %cst_5 : f32 to vector<16x128xf32>
    %16 = arith.subf %15, %14 : vector<16x128xf32>
    %17 = math.exp %16 : vector<16x128xf32>
    %cst_6 = arith.constant 1.000000e+00 : f32
    %18 = vector.broadcast %cst_6 : f32 to vector<16x128xf32>
    %19 = arith.subf %18, %17 : vector<16x128xf32>
    %20 = arith.mulf %19, %19 : vector<16x128xf32>
    %21 = arith.mulf %20, %14 : vector<16x128xf32>
    %c0_7 = arith.constant 0 : index
    %c0_8 = arith.constant 0 : index
    %22 = vector.load %arg4[%c0_7, %c0_8] : memref<8x128xf32, #tpu.memory_space<vmem>>, vector<8x128xf32>
    %23 = vector.shape_cast %21 : vector<16x128xf32> to vector<2x8x128xf32>
    %cst_9 = arith.constant dense<0.000000e+00> : vector<8x128xf32>
    %24 = vector.multi_reduction <add>, %23, %cst_9 [0] : vector<2x8x128xf32> to vector<8x128xf32>
    %25 = arith.addf %22, %24 : vector<8x128xf32>
    %c0_10 = arith.constant 0 : index
    %c0_11 = arith.constant 0 : index
    %26 = vector.load %arg4[%c0_10, %c0_11] : memref<8x128xf32, #tpu.memory_space<vmem>>, vector<8x128xf32>
    tpu.vector_store %arg4[%c0_10, %c0_11], %25 {strides = array<i32>} : memref<8x128xf32, #tpu.memory_space<vmem>>, vector<8x128xf32>,
    return
  }
  func.func @transform_0(%arg0: i32, %arg1: i32) -> (i32, i32) {
    %c1_i32 = arith.constant 1 : i32
    %0 = arith.muli %arg0, %c1_i32 : i32
    %1 = arith.addi %0, %arg1 : i32
    %c0_i32 = arith.constant 0 : i32
    %c0_i32_0 = arith.constant 0 : i32
    return %1, %c0_i32 : i32, i32
  }
  func.func @transform_1(%arg0: i32, %arg1: i32) -> (i32, i32) {
    %c1_i32 = arith.constant 1 : i32
    %0 = arith.muli %arg0, %c1_i32 : i32
    %1 = arith.addi %0, %arg1 : i32
    %c0_i32 = arith.constant 0 : i32
    %c0_i32_0 = arith.constant 0 : i32
    return %1, %c0_i32 : i32, i32
  }
  func.func @transform_2(%arg0: i32, %arg1: i32) -> (i32, i32) {
    %c0_i32 = arith.constant 0 : i32
    %c0_i32_0 = arith.constant 0 : i32
    return %arg0, %c0_i32 : i32, i32
  }
}

</mosaic_0001>

<llo_original>
// kernel: tpu_custom_call.1
$region0: #{tpu_custom_call.1}
  #allocation0 [shape = 'u32[]', space=smem, size = 0x4, offset = 0x4, fixed_abs, tag = 'smem constant byte address 0x4 - core index']
  #allocation1 [shape = 'u32[72,128]{1,0:T(1,128)}', space=vmem, size = 0x9000, scoped, tag = 'internal scratch']
  %s0 = inlined_call_operand.hbm [shape: f32[16,128], index: 0, kind: input, shape index: {}]
  %s1 = inlined_call_operand.hbm [shape: f32[16,128], index: 1, kind: input, shape index: {}]
  %s2 = inlined_call_operand.hbm [shape: f32[8,128], index: 2, kind: output, shape index: {}]
  %s3 = sld [smem:[#allocation0]]
  $region30: #{tpu_custom_call.1} parent=0
    _
  %s5 = ssub.s32 1, %s3
  %s6 = scalar_select 0, %s5, %s3
  $region1: #{tpu_custom_call.1} parent=0
    #allocation2 [shape = 'u8[8192]{0}', space=vmem, size = 0x2000, scoped, tag = 'input window, operand 0, single buffered']
    #allocation3 [shape = 's32[1]{0}', space=sflag, size = 0x4, scoped, tag = 'scoped memory for tpu_custom_call.1']
    #allocation4 [shape = 's32[1]{0}', space=sflag, size = 0x4, scoped, tag = 'scoped memory for tpu_custom_call.1']
    #allocation5 [shape = 'u8[8192]{0}', space=vmem, size = 0x2000, scoped, tag = 'input window, operand 1, single buffered']
    #allocation6 [shape = 's32[1]{0}', space=sflag, size = 0x4, scoped, tag = 'scoped memory for tpu_custom_call.1']
    #allocation7 [shape = 'u8[4096]{0}', space=vmem, size = 0x1000, scoped, tag = 'output window, operand 0, single buffered']
    %7 = vsyncpa [#allocation3], 0
    %8 = vsyncpa [#allocation6], 0
    %9 = vsyncpa [#allocation4], 0
    // Predicated region
    $region2: #{tpu_custom_call.1} parent=1 // pred_check
      _
    $region3: #{tpu_custom_call.1} parent=1 // pred_check_branch
      %11 = sbr.rel (0) target = $region5
    $region4: #{tpu_custom_call.1} parent=1 // pred_region
      %s12 = sadd.s32 0, 0
      %s13 = smul.u32 2, %s12
      %15 = vsyncadd [#allocation3], 0
      %s16 = smul.addr %s13, 8
      %s17 = scalar_lea.hbm %s0, %s16
      %s18 = sshll.u32 %s17, 4
      %s19 = int_to_ptr.hbm [resolvable:$true] %s18
      %s20 = sshll.u32 [#allocation2], 4
      %s21 = int_to_ptr.vmem [resolvable:$true] %s20
      %26 = dma.hbm_to_vmem [thread:$0]  %s19, 256, %s21, [#allocation3], 128, 128, 8
    $region5: #{tpu_custom_call.1} parent=1 // pred_fallthru
      _
    // Predicated region
    $region6: #{tpu_custom_call.1} parent=1 // pred_check
      _
    $region7: #{tpu_custom_call.1} parent=1 // pred_check_branch
      %28 = sbr.rel (0) target = $region9
    $region8: #{tpu_custom_call.1} parent=1 // pred_region
      %s29 = sadd.s32 0, 0
      %s30 = smul.u32 2, %s29
      %32 = vsyncadd [#allocation6], 0
      %s33 = smul.addr %s30, 8
      %s34 = scalar_lea.hbm %s1, %s33
      %s35 = sshll.u32 %s34, 4
      %s36 = int_to_ptr.hbm [resolvable:$true] %s35
      %s37 = sshll.u32 [#allocation5], 4
      %s38 = int_to_ptr.vmem [resolvable:$true] %s37
      %43 = dma.hbm_to_vmem [thread:$0]  %s36, 256, %s38, [#allocation6], 128, 128, 8
    $region9: #{tpu_custom_call.1} parent=1 // pred_fallthru
      _
    // Predicated region
    $region10: #{tpu_custom_call.1} parent=1 // pred_check
      _
    $region11: #{tpu_custom_call.1} parent=1 // pred_check_branch
      %45 = sbr.rel (0) target = $region13
    $region12: #{tpu_custom_call.1} parent=1 // pred_region
      %47 = dma.done [#allocation3], 256
    $region13: #{tpu_custom_call.1} parent=1 // pred_fallthru
      _
    // Predicated region
    $region14: #{tpu_custom_call.1} parent=1 // pred_check
      _
    $region15: #{tpu_custom_call.1} parent=1 // pred_check_branch
      %49 = sbr.rel (0) target = $region17
    $region16: #{tpu_custom_call.1} parent=1 // pred_region
      %51 = dma.done [#allocation6], 256
    $region17: #{tpu_custom_call.1} parent=1 // pred_fallthru
      _
    %s52 = sadd.s32 0, 0
    %s53 = smul.u32 2, %s52
    %s54 = sadd.s32 0, 0
    %s55 = smul.u32 2, %s54
    %p56 = scmp.eq.s32.totalorder 0, 0
    // Predicated region
    $region18: #{tpu_custom_call.1} parent=1 // pred_check
      %p57 = pneg %p56
    $region19: #{tpu_custom_call.1} parent=1 // pred_check_branch
      %59 = sbr.rel (%p57) target = $region21
    $region20: #{tpu_custom_call.1} parent=1 // pred_region
      %60 = vst [vmem:[#allocation7] sm:$0xff] 0.0
    $region21: #{tpu_custom_call.1} parent=1 // pred_fallthru
      _
    %v61 = vld [vmem:[#allocation2] sm:$0xff]
    %v62 = vld [vmem:[#allocation2 + $0x8] sm:$0xff]
    %v63 = vld [vmem:[#allocation5] sm:$0xff]
    %v64 = vld [vmem:[#allocation5 + $0x8] sm:$0xff]
    %v65 = vmax.f32 %v61, 0.0
    %v66 = vmax.f32 %v62, 0.0
    %v67 = vmul.f32 %v61, %v63
    %v68 = vmul.f32 %v62, %v64
    %v69 = vsub.f32 %v65, %v67
    %v70 = vsub.f32 %v66, %v68
    %v71 = vand.u32 2147483647, %v61
    %v72 = vand.u32 2147483647, %v62
    %v73 = vsub.f32 0.0, %v71
    %v74 = vsub.f32 0.0, %v72
    %v75 = vmul.f32 %v73, 1.442695
    %v76 = vpow.pop %v75
    %v77 = vmul.f32 %v74, 1.442695
    %v78 = vpow.pop %v77
    %v79 = vadd.f32 %v76, 1.0
    %v80 = vlog2.pop %v79
    %v81 = vmul.f32 %v80, 0.6931472
    %v82 = vmul.f32 -0.5, %v76
    %v83 = vadd.f32 %v82, 1.0
    %v84 = vmul.f32 %v83, %v76
    %v85 = vand.u32 2147483647, %v76
    %vm86 = vcmp.lt.f32.partialorder %v85, 0.0004427343
    %v87 = vsel %vm86, %v84, %v81
    %v88 = vadd.f32 %v78, 1.0
    %v89 = vlog2.pop %v88
    %v90 = vmul.f32 %v89, 0.6931472
    %v91 = vmul.f32 -0.5, %v78
    %v92 = vadd.f32 %v91, 1.0
    %v93 = vmul.f32 %v92, %v78
    %v94 = vand.u32 2147483647, %v78
    %vm95 = vcmp.lt.f32.partialorder %v94, 0.0004427343
    %v96 = vsel %vm95, %v93, %v90
    %v97 = vadd.f32 %v69, %v87
    %v98 = vadd.f32 %v70, %v96
    %v99 = vsub.f32 0.0, %v97
    %v100 = vsub.f32 0.0, %v98
    %v101 = vmul.f32 %v99, 1.442695
    %v102 = vpow.pop %v101
    %v103 = vmul.f32 %v100, 1.442695
    %v104 = vpow.pop %v103
    %v105 = vsub.f32 1.0, %v102
    %v106 = vsub.f32 1.0, %v104
    %v107 = vmul.f32 %v105, %v105
    %v108 = vmul.f32 %v106, %v106
    %v109 = vmul.f32 %v107, %v97
    %v110 = vmul.f32 %v108, %v98
    %v111 = vld [vmem:[#allocation7] sm:$0xff]
    %v112 = vadd.f32 %v109, %v110
    %v113 = vadd.f32 %v111, %v112
    %114 = vst [vmem:[#allocation7] sm:$0xff] %v113
    // Predicated region
    $region22: #{tpu_custom_call.1} parent=1 // pred_check
      _
    $region23: #{tpu_custom_call.1} parent=1 // pred_check_branch
      %116 = sbr.rel (0) target = $region25
    $region24: #{tpu_custom_call.1} parent=1 // pred_region
      %118 = vsyncadd [#allocation4], 0
      %s120 = sshll.u32 [#allocation7], 4
      %s121 = int_to_ptr.vmem [resolvable:$true] %s120
      %s122 = sshll.u32 %s2, 4
      %s123 = int_to_ptr.hbm [resolvable:$true] %s122
      %125 = dma.vmem_to_hbm [thread:$0]  %s121, 128, %s123, [#allocation4]
    $region25: #{tpu_custom_call.1} parent=1 // pred_fallthru
      _
    // Predicated region
    $region26: #{tpu_custom_call.1} parent=1 // pred_check
      _
    $region27: #{tpu_custom_call.1} parent=1 // pred_check_branch
      %127 = sbr.rel (0) target = $region29
    $region28: #{tpu_custom_call.1} parent=1 // pred_region
      %129 = dma.done [#allocation4], 128
    $region29: #{tpu_custom_call.1} parent=1 // pred_fallthru
      _
    %130 = vsyncpa [#allocation3], 1
    %131 = vsyncpa [#allocation6], 1
    %132 = vsyncpa [#allocation4], 1

</llo_original>
